<compile_context>
chip_gen: v5e
topology: v5e:2x2
jax: 0.10.0
libtpu: 0.0.40
codegen_flags: <defaults>
</compile_context>

<pallas_src>
import functools
from math import log, ceil, floor

import jax
import jax.numpy as jnp
from jax.experimental import pallas as pl
from jax.experimental.pallas import tpu as pltpu


def _doda_hyperparams(channel: int, n: int = 2, b: int = 2, inter: str = "ceil"):
    """Reproduce DODA.__init__ arithmetic exactly."""
    kernel_size = int(abs((log(channel, 2) + 1) / 2))
    kernel_size = kernel_size if kernel_size % 2 else kernel_size + 1
    layer_size = 1 + (log(channel, 2) - b) / (2 * n)
    layer_size = ceil(layer_size) if inter == "ceil" else floor(layer_size)
    return kernel_size, layer_size


def _masked_tap_weights(conv_weight, channel, kernel_size, c_pad):
    """(k, c_pad) rows: row j = w[j] wherever tap j's read (i + j - pad) lands
    inside [0, channel), else 0.  Baking the Conv1d zero-padding mask into the
    weights keeps the in-kernel loop to shift + FMA only and prevents padded
    lanes (>= channel) from leaking into valid lanes across conv stages."""
    pad = kernel_size // 2
    lane = jnp.arange(c_pad)[None, :]                  # (1, c_pad)
    off = jnp.arange(kernel_size)[:, None] - pad       # (k, 1) tap offsets d = j - pad
    valid = (lane + off >= 0) & (lane + off < channel)
    return jnp.where(valid, conv_weight.astype(jnp.float32)[:, None], 0.0)


def _shift_lanes(h, d):
    """s[:, i] = h[:, i + d], zero-filled at the (padded) lane-array edges.
    d is a small static Python int, so this lowers to a static lane shift."""
    if d == 0:
        return h
    rows = h.shape[0]
    zeros = jnp.zeros((rows, abs(d)), h.dtype)
    if d > 0:
        return jnp.concatenate([h[:, d:], zeros], axis=1)
    return jnp.concatenate([zeros, h[:, :d]], axis=1)


def _doda_kernel(x_ref, wm_ref, o_ref, *, kernel_size, pad, num_convs):
    # x_ref: (TB, c_pad) input block; wm_ref: (k, c_pad) masked tap weights
    # (same block every grid step -> stays VMEM resident); o_ref: (TB, c_pad).
    x = x_ref[...]                          # read once; reused for the residual
    wm = wm_ref[...]

    h = x
    for _ in range(num_convs):              # static, tiny trip count (1 + layer_size)
        acc = jnp.zeros_like(h)
        for j in range(kernel_size):        # k is 3 or 5: fully unrolled
            d = j - pad                     # tap j reads h[i + d] with zero padding
            acc = acc + _shift_lanes(h, d) * wm[j:j + 1, :]
        h = acc

    # sigmoid gate + residual (exp runs on the otherwise-idle EUP slot).
    gate = 1.0 / (1.0 + jnp.exp(-h))
    o_ref[...] = x + gate


def _pick_batch_tile(batch: int, c_pad: int) -> int:
    """Batch tile: multiple of 8 (sublane rule) unless batch is small/odd
    (then block dim == full array dim, which is also legal), sized so one
    (TB, c_pad) f32 block is ~<=2 MiB (double-buffered in+out fits easily
    under the scoped-VMEM limit on all of v5e/v6e/v7x)."""
    if batch % 8 != 0:
        return batch
    budget_rows = max(8, (2 * 1024 * 1024) // (c_pad * 4) // 8 * 8)
    return min(batch, budget_rows)


def doda_forward(x_nchw, conv_weight, channel, n=2, b=2, inter="ceil"):
    """x_nchw: (B, C, 1, 1) float32.  conv_weight: (kernel_size,) float32."""
    kernel_size, layer_size = _doda_hyperparams(channel, n, b, inter)
    assert conv_weight.shape == (kernel_size,)
    num_convs = 1 + layer_size              # first conv + layer_size repeats
    pad = kernel_size // 2

    B, C, H, W = x_nchw.shape
    assert C == channel and H == 1 and W == 1

    # Lane-dense layout: channels on the lane axis, padded to a multiple of 128.
    c_pad = ((C + 127) // 128) * 128
    x2d = x_nchw.reshape(B, C).astype(jnp.float32)     # glue: NCHW squeeze -> (B, C)
    if c_pad != C:
        x2d = jnp.pad(x2d, ((0, 0), (0, c_pad - C)))

    wm = _masked_tap_weights(conv_weight, C, kernel_size, c_pad)   # (k, c_pad)

    tb = _pick_batch_tile(B, c_pad)
    grid = (pl.cdiv(B, tb),)

    out2d = pl.pallas_call(
        functools.partial(_doda_kernel, kernel_size=kernel_size, pad=pad,
                          num_convs=num_convs),
        out_shape=jax.ShapeDtypeStruct((B, c_pad), jnp.float32),
        grid=grid,
        in_specs=[
            pl.BlockSpec((tb, c_pad), lambda i: (i, 0)),           # batch-tiled input
            pl.BlockSpec((kernel_size, c_pad), lambda i: (0, 0)),  # taps stay resident
        ],
        out_specs=pl.BlockSpec((tb, c_pad), lambda i: (i, 0)),
        compiler_params=pltpu.CompilerParams(
            dimension_semantics=("parallel",),     # batch axis: 2-TC shardable on v7x
            vmem_limit_bytes=32 * 1024 * 1024,
        ),
    )(x2d, wm)

    return out2d[:, :C].reshape(B, C, 1, 1)            # glue: back to NCHW (B, C, 1, 1)


def _reference(x_nchw, conv_weight, channel, n=2, b=2, inter="ceil"):
    """Pure-JAX reference mirroring the PyTorch forward (exact f32)."""
    kernel_size, layer_size = _doda_hyperparams(channel, n, b, inter)
    pad = kernel_size // 2
    B, C, _, _ = x_nchw.shape
    h = x_nchw.reshape(B, C)

    def conv1d_same(v):
        vp = jnp.pad(v, ((0, 0), (pad, pad)))
        out = jnp.zeros_like(v)
        for j in range(kernel_size):
            out = out + conv_weight[j] * vp[:, j:j + C]
        return out

    h = conv1d_same(h)
    for _ in range(layer_size):
        h = conv1d_same(h)
    h = jax.nn.sigmoid(h)
    return x_nchw + h.reshape(B, C, 1, 1)


if __name__ == "__main__":
    # Two small configs: (B=2, C=32) -> k=3, 3 conv applications, channel pad 32->128;
    # (B=16, C=256) -> k=5, 4 conv applications, already lane-dense.
    for (B, CHANNEL) in [(2, 32), (16, 256)]:
        kernel_size, layer_size = _doda_hyperparams(CHANNEL)

        key = jax.random.PRNGKey(0)
        kx, kw = jax.random.split(key)
        x = jax.random.normal(kx, (B, CHANNEL, 1, 1), dtype=jnp.float32)
        # Deterministic synthetic Conv1d(1,1,k,bias=False) weight -> flat (k,).
        conv_w = (jax.random.normal(kw, (kernel_size,), dtype=jnp.float32)
                  / jnp.sqrt(jnp.float32(kernel_size)))

        out = jax.block_until_ready(doda_forward(x, conv_w, CHANNEL))
        ref = _reference(x, conv_w, CHANNEL)

        assert out.shape == (B, CHANNEL, 1, 1)
        assert jnp.allclose(out, ref, atol=1e-5, rtol=1e-5), \
            f"mismatch vs reference at B={B}, C={CHANNEL}"

    print("KERNEL_OK")
</pallas_src>

<mosaic_0001>
module attributes {stable_mosaic.version = 11 : i64} {
  func.func @_doda_kernel(%arg0: i32, %arg1: memref<2x128xf32, #tpu.memory_space<vmem>>, %arg2: memref<3x128xf32, #tpu.memory_space<vmem>>, %arg3: memref<2x128xf32, #tpu.memory_space<vmem>>) attributes {dimension_semantics = [#tpu.dimension_semantics<parallel>], iteration_bounds = array<i64: 1>, scalar_prefetch = 0 : i64, scratch_operands = 0 : i64, tpu.core_type = #tpu.core_type<tc>, window_params = [{transform_indices = @transform_0, window_bounds = array<i64: 2, 128>}, {pipeline_mode = #tpu.pipeline_mode<synchronous>, transform_indices = @transform_1, window_bounds = array<i64: 3, 128>}, {transform_indices = @transform_2, window_bounds = array<i64: 2, 128>}]} {
    %c0 = arith.constant 0 : index
    %c0_0 = arith.constant 0 : index
    %0 = vector.load %arg1[%c0, %c0_0] : memref<2x128xf32, #tpu.memory_space<vmem>>, vector<2x128xf32>
    %c0_1 = arith.constant 0 : index
    %c0_2 = arith.constant 0 : index
    %1 = vector.load %arg2[%c0_1, %c0_2] : memref<3x128xf32, #tpu.memory_space<vmem>>, vector<3x128xf32>
    %cst = arith.constant 0.000000e+00 : f32
    %2 = vector.broadcast %cst : f32 to vector<2x128xf32>
    %cst_3 = arith.constant 0.000000e+00 : f32
    %3 = vector.broadcast %cst_3 : f32 to vector<2x1xf32>
    %4 = vector.extract_strided_slice %0 {offsets = [0, 0], sizes = [2, 127], strides = [1, 1]} : vector<2x128xf32> to vector<2x127xf32>
    %5 = tpu.concatenate %3, %4 in 1 : vector<2x1xf32>, vector<2x127xf32> -> vector<2x128xf32>
    %6 = vector.extract_strided_slice %1 {offsets = [0, 0], sizes = [1, 128], strides = [1, 1]} : vector<3x128xf32> to vector<1x128xf32>
    %7 = vector.broadcast %6 : vector<1x128xf32> to vector<2x128xf32>
    %8 = arith.mulf %5, %7 : vector<2x128xf32>
    %9 = arith.addf %2, %8 : vector<2x128xf32>
    %10 = vector.extract_strided_slice %1 {offsets = [1, 0], sizes = [1, 128], strides = [1, 1]} : vector<3x128xf32> to vector<1x128xf32>
    %11 = vector.broadcast %10 : vector<1x128xf32> to vector<2x128xf32>
    %12 = arith.mulf %0, %11 : vector<2x128xf32>
    %13 = arith.addf %9, %12 : vector<2x128xf32>
    %cst_4 = arith.constant 0.000000e+00 : f32
    %14 = vector.broadcast %cst_4 : f32 to vector<2x1xf32>
    %15 = vector.extract_strided_slice %0 {offsets = [0, 1], sizes = [2, 127], strides = [1, 1]} : vector<2x128xf32> to vector<2x127xf32>
    %16 = tpu.concatenate %15, %14 in 1 : vector<2x127xf32>, vector<2x1xf32> -> vector<2x128xf32>
    %17 = vector.extract_strided_slice %1 {offsets = [2, 0], sizes = [1, 128], strides = [1, 1]} : vector<3x128xf32> to vector<1x128xf32>
    %18 = vector.broadcast %17 : vector<1x128xf32> to vector<2x128xf32>
    %19 = arith.mulf %16, %18 : vector<2x128xf32>
    %20 = arith.addf %13, %19 : vector<2x128xf32>
    %cst_5 = arith.constant 0.000000e+00 : f32
    %21 = vector.broadcast %cst_5 : f32 to vector<2x128xf32>
    %cst_6 = arith.constant 0.000000e+00 : f32
    %22 = vector.broadcast %cst_6 : f32 to vector<2x1xf32>
    %23 = vector.extract_strided_slice %20 {offsets = [0, 0], sizes = [2, 127], strides = [1, 1]} : vector<2x128xf32> to vector<2x127xf32>
    %24 = tpu.concatenate %22, %23 in 1 : vector<2x1xf32>, vector<2x127xf32> -> vector<2x128xf32>
    %25 = vector.extract_strided_slice %1 {offsets = [0, 0], sizes = [1, 128], strides = [1, 1]} : vector<3x128xf32> to vector<1x128xf32>
    %26 = vector.broadcast %25 : vector<1x128xf32> to vector<2x128xf32>
    %27 = arith.mulf %24, %26 : vector<2x128xf32>
    %28 = arith.addf %21, %27 : vector<2x128xf32>
    %29 = vector.extract_strided_slice %1 {offsets = [1, 0], sizes = [1, 128], strides = [1, 1]} : vector<3x128xf32> to vector<1x128xf32>
    %30 = vector.broadcast %29 : vector<1x128xf32> to vector<2x128xf32>
    %31 = arith.mulf %20, %30 : vector<2x128xf32>
    %32 = arith.addf %28, %31 : vector<2x128xf32>
    %cst_7 = arith.constant 0.000000e+00 : f32
    %33 = vector.broadcast %cst_7 : f32 to vector<2x1xf32>
    %34 = vector.extract_strided_slice %20 {offsets = [0, 1], sizes = [2, 127], strides = [1, 1]} : vector<2x128xf32> to vector<2x127xf32>
    %35 = tpu.concatenate %34, %33 in 1 : vector<2x127xf32>, vector<2x1xf32> -> vector<2x128xf32>
    %36 = vector.extract_strided_slice %1 {offsets = [2, 0], sizes = [1, 128], strides = [1, 1]} : vector<3x128xf32> to vector<1x128xf32>
    %37 = vector.broadcast %36 : vector<1x128xf32> to vector<2x128xf32>
    %38 = arith.mulf %35, %37 : vector<2x128xf32>
    %39 = arith.addf %32, %38 : vector<2x128xf32>
    %cst_8 = arith.constant 0.000000e+00 : f32
    %40 = vector.broadcast %cst_8 : f32 to vector<2x128xf32>
    %cst_9 = arith.constant 0.000000e+00 : f32
    %41 = vector.broadcast %cst_9 : f32 to vector<2x1xf32>
    %42 = vector.extract_strided_slice %39 {offsets = [0, 0], sizes = [2, 127], strides = [1, 1]} : vector<2x128xf32> to vector<2x127xf32>
    %43 = tpu.concatenate %41, %42 in 1 : vector<2x1xf32>, vector<2x127xf32> -> vector<2x128xf32>
    %44 = vector.extract_strided_slice %1 {offsets = [0, 0], sizes = [1, 128], strides = [1, 1]} : vector<3x128xf32> to vector<1x128xf32>
    %45 = vector.broadcast %44 : vector<1x128xf32> to vector<2x128xf32>
    %46 = arith.mulf %43, %45 : vector<2x128xf32>
    %47 = arith.addf %40, %46 : vector<2x128xf32>
    %48 = vector.extract_strided_slice %1 {offsets = [1, 0], sizes = [1, 128], strides = [1, 1]} : vector<3x128xf32> to vector<1x128xf32>
    %49 = vector.broadcast %48 : vector<1x128xf32> to vector<2x128xf32>
    %50 = arith.mulf %39, %49 : vector<2x128xf32>
    %51 = arith.addf %47, %50 : vector<2x128xf32>
    %cst_10 = arith.constant 0.000000e+00 : f32
    %52 = vector.broadcast %cst_10 : f32 to vector<2x1xf32>
    %53 = vector.extract_strided_slice %39 {offsets = [0, 1], sizes = [2, 127], strides = [1, 1]} : vector<2x128xf32> to vector<2x127xf32>
    %54 = tpu.concatenate %53, %52 in 1 : vector<2x127xf32>, vector<2x1xf32> -> vector<2x128xf32>
    %55 = vector.extract_strided_slice %1 {offsets = [2, 0], sizes = [1, 128], strides = [1, 1]} : vector<3x128xf32> to vector<1x128xf32>
    %56 = vector.broadcast %55 : vector<1x128xf32> to vector<2x128xf32>
    %57 = arith.mulf %54, %56 : vector<2x128xf32>
    %58 = arith.addf %51, %57 : vector<2x128xf32>
    %cst_11 = arith.constant 0.000000e+00 : f32
    %59 = vector.broadcast %cst_11 : f32 to vector<2x128xf32>
    %60 = arith.subf %59, %58 : vector<2x128xf32>
    %61 = math.exp %60 : vector<2x128xf32>
    %cst_12 = arith.constant 1.000000e+00 : f32
    %62 = vector.broadcast %cst_12 : f32 to vector<2x128xf32>
    %63 = arith.addf %62, %61 : vector<2x128xf32>
    %cst_13 = arith.constant 1.000000e+00 : f32
    %64 = vector.broadcast %cst_13 : f32 to vector<2x128xf32>
    %65 = arith.divf %64, %63 : vector<2x128xf32>
    %66 = arith.addf %0, %65 : vector<2x128xf32>
    %c0_14 = arith.constant 0 : index
    %c0_15 = arith.constant 0 : index
    %67 = vector.load %arg3[%c0_14, %c0_15] : memref<2x128xf32, #tpu.memory_space<vmem>>, vector<2x128xf32>
    tpu.vector_store %arg3[%c0_14, %c0_15], %66 {strides = array<i32>} : memref<2x128xf32, #tpu.memory_space<vmem>>, vector<2x128xf32>,
    return
  }
  func.func @transform_0(%arg0: i32) -> (i32, i32) {
    %c0_i32 = arith.constant 0 : i32
    %c0_i32_0 = arith.constant 0 : i32
    return %arg0, %c0_i32 : i32, i32
  }
  func.func @transform_1(%arg0: i32) -> (i32, i32) {
    %c0_i32 = arith.constant 0 : i32
    %c0_i32_0 = arith.constant 0 : i32
    %c0_i32_1 = arith.constant 0 : i32
    return %c0_i32, %c0_i32_0 : i32, i32
  }
  func.func @transform_2(%arg0: i32) -> (i32, i32) {
    %c0_i32 = arith.constant 0 : i32
    %c0_i32_0 = arith.constant 0 : i32
    return %arg0, %c0_i32 : i32, i32
  }
}

</mosaic_0001>

<llo_original>
// kernel: tpu_custom_call.1
$region0: #{tpu_custom_call.1}
  #allocation0 [shape = 'u32[]', space=smem, size = 0x4, offset = 0x4, fixed_abs, tag = 'smem constant byte address 0x4 - core index']
  #allocation1 [shape = 'u32[72,128]{1,0:T(1,128)}', space=vmem, size = 0x9000, scoped, tag = 'internal scratch']
  %s0 = inlined_call_operand.hbm [shape: f32[2,128], index: 0, kind: input, shape index: {}]
  %s1 = inlined_call_operand.hbm [shape: f32[3,128], index: 1, kind: input, shape index: {}]
  %s2 = inlined_call_operand.hbm [shape: f32[2,128], index: 2, kind: output, shape index: {}]
  %s3 = sld [smem:[#allocation0]]
  $region26: #{tpu_custom_call.1} parent=0
    _
  %s5 = ssub.s32 1, %s3
  %s6 = scalar_select 0, %s5, %s3
  $region1: #{tpu_custom_call.1} parent=0
    #allocation2 [shape = 'u8[1024]{0}', space=vmem, size = 0x400, scoped, tag = 'input window, operand 0, single buffered']
    #allocation3 [shape = 's32[1]{0}', space=sflag, size = 0x4, scoped, tag = 'scoped memory for tpu_custom_call.1']
    #allocation4 [shape = 's32[1]{0}', space=sflag, size = 0x4, scoped, tag = 'scoped memory for tpu_custom_call.1']
    #allocation5 [shape = 'u8[2048]{0}', space=vmem, size = 0x800, scoped, tag = 'input window, operand 1, single buffered']
    #allocation6 [shape = 's32[1]{0}', space=sflag, size = 0x4, scoped, tag = 'scoped memory for tpu_custom_call.1']
    #allocation7 [shape = 'u8[1024]{0}', space=vmem, size = 0x400, scoped, tag = 'output window, operand 0, single buffered']
    %7 = vsyncpa [#allocation3], 0
    %8 = vsyncpa [#allocation6], 0
    %9 = vsyncpa [#allocation4], 0
    // Predicated region
    $region2: #{tpu_custom_call.1} parent=1 // pred_check
      _
    $region3: #{tpu_custom_call.1} parent=1 // pred_check_branch
      %11 = sbr.rel (0) target = $region5
    $region4: #{tpu_custom_call.1} parent=1 // pred_region
      %13 = vsyncadd [#allocation3], 0
      %s15 = sshll.u32 %s0, 4
      %s16 = int_to_ptr.hbm [resolvable:$true] %s15
      %s17 = sshll.u32 [#allocation2], 4
      %s18 = int_to_ptr.vmem [resolvable:$true] %s17
      %20 = dma.hbm_to_vmem [thread:$0]  %s16, 32, %s18, [#allocation3]
    $region5: #{tpu_custom_call.1} parent=1 // pred_fallthru
      _
    // Predicated region
    $region6: #{tpu_custom_call.1} parent=1 // pred_check
      _
    $region7: #{tpu_custom_call.1} parent=1 // pred_check_branch
      %22 = sbr.rel (0) target = $region9
    $region8: #{tpu_custom_call.1} parent=1 // pred_region
      %24 = vsyncadd [#allocation6], 0
      %s26 = sshll.u32 %s1, 4
      %s27 = int_to_ptr.hbm [resolvable:$true] %s26
      %s28 = sshll.u32 [#allocation5], 4
      %s29 = int_to_ptr.vmem [resolvable:$true] %s28
      %31 = dma.hbm_to_vmem [thread:$0]  %s27, 64, %s29, [#allocation6]
    $region9: #{tpu_custom_call.1} parent=1 // pred_fallthru
      _
    // Predicated region
    $region10: #{tpu_custom_call.1} parent=1 // pred_check
      _
    $region11: #{tpu_custom_call.1} parent=1 // pred_check_branch
      %33 = sbr.rel (0) target = $region13
    $region12: #{tpu_custom_call.1} parent=1 // pred_region
      %35 = dma.done [#allocation3], 32
    $region13: #{tpu_custom_call.1} parent=1 // pred_fallthru
      _
    // Predicated region
    $region14: #{tpu_custom_call.1} parent=1 // pred_check
      _
    $region15: #{tpu_custom_call.1} parent=1 // pred_check_branch
      %37 = sbr.rel (0) target = $region17
    $region16: #{tpu_custom_call.1} parent=1 // pred_region
      %39 = dma.done [#allocation6], 64
    $region17: #{tpu_custom_call.1} parent=1 // pred_fallthru
      _
    %v40 = vld [vmem:[#allocation2] sm:$0x3]
    %v41 = vld [vmem:[#allocation5] sm:$0x7]
    %43 = vrot.lane.b32.xlu0 %v40, 1
    %v44 = vpop.permute.xlu0 %43
    %vm46 = vcmask 7168
    %v47 = vsel %vm46, 0.0, %v44
    %v48 = vperm.slane %v41, 0
    %v49 = vmul.f32 %v47, %v48
    %v50 = vadd.f32 %v49, 0.0
    %v51 = vperm.slane %v41, 1
    %v52 = vmul.f32 %v40, %v51
    %v53 = vadd.f32 %v50, %v52
    %54 = vrot.lane.b32.xlu0 %v40, 127
    %v55 = vpop.permute.xlu0 %54
    %vm57 = vcmask 1039360
    %v58 = vsel %vm57, %v55, 0.0
    %v59 = vperm.slane %v41, 2
    %v60 = vmul.f32 %v58, %v59
    %v61 = vadd.f32 %v53, %v60
    %63 = vrot.lane.b32.xlu0 %v61, 1
    %v64 = vpop.permute.xlu0 %63
    %v66 = vsel %vm46, 0.0, %v64
    %v67 = vmul.f32 %v66, %v48
    %v68 = vadd.f32 %v67, 0.0
    %v69 = vmul.f32 %v61, %v51
    %v70 = vadd.f32 %v68, %v69
    %71 = vrot.lane.b32.xlu0 %v61, 127
    %v72 = vpop.permute.xlu0 %71
    %v74 = vsel %vm57, %v72, 0.0
    %v75 = vmul.f32 %v74, %v59
    %v76 = vadd.f32 %v70, %v75
    %78 = vrot.lane.b32.xlu0 %v76, 1
    %v79 = vpop.permute.xlu0 %78
    %v81 = vsel %vm46, 0.0, %v79
    %v82 = vmul.f32 %v81, %v48
    %v83 = vadd.f32 %v82, 0.0
    %v84 = vmul.f32 %v76, %v51
    %v85 = vadd.f32 %v83, %v84
    %86 = vrot.lane.b32.xlu0 %v76, 127
    %v87 = vpop.permute.xlu0 %86
    %v89 = vsel %vm57, %v87, 0.0
    %v90 = vmul.f32 %v89, %v59
    %v91 = vadd.f32 %v85, %v90
    %v92 = vsub.f32 0.0, %v91
    %v93 = vmul.f32 %v92, 1.442695
    %v94 = vpow.pop %v93
    %v95 = vadd.f32 %v94, 1.0
    %v96 = vrcp.pop %v95
    %v97 = vmul.f32 %v95, %v96
    %v98 = vsub.f32 1.0, %v97
    %v99 = vmul.f32 %v96, %v98
    %v100 = vadd.f32 %v96, %v99
    %vm101 = vweird.f32 %v95
    %vm102 = vweird.f32 %v96
    %vm103 = vmor %vm101, %vm102
    %v104 = vsel %vm103, %v96, %v100
    %v105 = vand.u32 2147483647, %v95
    %vm106 = vcmp.eq.f32.partialorder %v105, 8.507059e+37
    %v107 = vand.u32 %v95, 2147483648
    %v108 = vor.u32 1.1754944e-38, %v107
    %v109 = vsel %vm106, %v108, %v104
    %v110 = vmul.f32 1.0, %v109
    %v111 = vadd.f32 %v40, %v110
    %112 = vst [vmem:[#allocation7] sm:$0x3] %v111
    // Predicated region
    $region18: #{tpu_custom_call.1} parent=1 // pred_check
      _
    $region19: #{tpu_custom_call.1} parent=1 // pred_check_branch
      %114 = sbr.rel (0) target = $region21
    $region20: #{tpu_custom_call.1} parent=1 // pred_region
      %116 = vsyncadd [#allocation4], 0
      %s118 = sshll.u32 [#allocation7], 4
      %s119 = int_to_ptr.vmem [resolvable:$true] %s118
      %s120 = sshll.u32 %s2, 4
      %s121 = int_to_ptr.hbm [resolvable:$true] %s120
      %123 = dma.vmem_to_hbm [thread:$0]  %s119, 32, %s121, [#allocation4]
    $region21: #{tpu_custom_call.1} parent=1 // pred_fallthru
      _
    // Predicated region
    $region22: #{tpu_custom_call.1} parent=1 // pred_check
      _
    $region23: #{tpu_custom_call.1} parent=1 // pred_check_branch
      %125 = sbr.rel (0) target = $region25
    $region24: #{tpu_custom_call.1} parent=1 // pred_region
      %127 = dma.done [#allocation4], 32
    $region25: #{tpu_custom_call.1} parent=1 // pred_fallthru
      _
    %128 = vsyncpa [#allocation3], 1
    %129 = vsyncpa [#allocation6], 1
    %130 = vsyncpa [#allocation4], 1

</llo_original>
